<compile_context>
chip_gen: v5e
topology: v5e:2x2
jax: 0.10.0
libtpu: 0.0.40
codegen_flags: <defaults>
</compile_context>

<pallas_src>
import jax
import jax.numpy as jnp
from jax.experimental import pallas as pl
from jax.experimental.pallas import tpu as pltpu

IGNORE_LB = 255
_LANE = 128
_TILE_BUDGET_BYTES = 8 * 1024 * 1024   # per logits block; x2 for double buffering


def _round_up(x, m):
    return (x + m - 1) // m * m


def _wce_stats_kernel(logits_ref, labels_ref, counts_ref, sums_ref):
    # logits_ref: (1, C, TP) native dtype ; labels_ref: (1, 1, TP) int32
    # counts_ref / sums_ref: (1, C, 1) f32, resident across the pixel-tile axis.
    pj = pl.program_id(2)

    @pl.when(pj == 0)
    def _init():
        counts_ref[...] = jnp.zeros_like(counts_ref)
        sums_ref[...] = jnp.zeros_like(sums_ref)

    x = logits_ref[0].astype(jnp.float32)        # (C, TP) cast in-register, not in HBM
    lab = labels_ref[0]                          # (1, TP) int32
    C, TP = x.shape

    # per-pixel log-sum-exp over classes (classes on the sublane axis -> cheap reduce)
    m = jnp.max(x, axis=0, keepdims=True)                               # (1, TP)
    lse = m + jnp.log(jnp.sum(jnp.exp(x - m), axis=0, keepdims=True))   # (1, TP)

    # gather the logit of the labelled class via one-hot (C is small)
    cls_ids = jax.lax.broadcasted_iota(jnp.int32, (C, TP), 0)           # (C, TP)
    onehot = (cls_ids == lab).astype(jnp.float32)                       # (C, TP)
    picked = jnp.sum(onehot * x, axis=0, keepdims=True)                 # (1, TP)

    valid = lab != IGNORE_LB                     # host-padded tail pixels are 255 too
    loss = jnp.where(valid, lse - picked, 0.0)   # (1, TP)

    # accumulate per-class statistics (lane-axis reductions run on the XLU, which has
    # slack in this HBM-bound kernel); HBM writeback happens only when the output
    # block index changes, i.e. once per (batch, split).
    counts_ref[0] += jnp.sum(onehot, axis=1, keepdims=True)             # (C, 1)
    sums_ref[0] += jnp.sum(onehot * loss, axis=1, keepdims=True)        # (C, 1)


def wce_loss(logits, labels, thresh=0.7, n_min=0, ignore_lb=IGNORE_LB, *,
             pixel_tile=None):
    """Forward pass of WCELoss.

    `thresh` / `n_min` exist only in the PyTorch module's __init__ and are unused by
    forward; they are accepted and ignored.  `pixel_tile` optionally overrides the
    auto-selected pixel-tile size (testing / tuning hook).
    """
    N, C, H, W = logits.shape
    P = H * W
    itemsize = jnp.dtype(logits.dtype).itemsize

    # ---- pick the pixel tile: multiple of 128 lanes, ~8 MiB per logits block ----
    if pixel_tile is None:
        bytes_per_col = C * itemsize + 4                  # logits column + int32 label
        tp = (_TILE_BUDGET_BYTES // bytes_per_col) // _LANE * _LANE
        tp = max(_LANE, min(32 * 1024, tp))
    else:
        tp = _round_up(max(int(pixel_tile), _LANE), _LANE)
    tp = min(tp, _round_up(P, _LANE))

    # With batch == 1, split the pixel axis 2-way along a 'parallel' grid axis so both
    # v7x TensorCores get work (per-split partial stats are summed in the JAX glue).
    nsplit = 2 if N < 2 else 1
    P_pad = _round_up(P, tp * nsplit)
    pt_per_split = P_pad // (tp * nsplit)

    # NOTE: no f32 upcast here — logits stream HBM->VMEM in their native dtype.
    logits_r = logits.reshape(N, C, P)
    labels_r = labels.astype(jnp.int32).reshape(N, 1, P)
    if P_pad != P:
        pad = P_pad - P
        logits_r = jnp.pad(logits_r, ((0, 0), (0, 0), (0, pad)))
        labels_r = jnp.pad(labels_r, ((0, 0), (0, 0), (0, pad)),
                           constant_values=ignore_lb)

    block_bytes = C * tp * itemsize + tp * 4
    vmem_limit = int(min(96 * 2**20, max(32 * 2**20, 4 * block_bytes)))

    counts3, sums3 = pl.pallas_call(
        _wce_stats_kernel,
        out_shape=(
            jax.ShapeDtypeStruct((N * nsplit, C, 1), jnp.float32),
            jax.ShapeDtypeStruct((N * nsplit, C, 1), jnp.float32),
        ),
        grid_spec=pltpu.PrefetchScalarGridSpec(
            num_scalar_prefetch=0,
            grid=(N, nsplit, pt_per_split),
            in_specs=[
                pl.BlockSpec((1, C, tp),
                             lambda n, s, pj: (n, 0, s * pt_per_split + pj)),
                pl.BlockSpec((1, 1, tp),
                             lambda n, s, pj: (n, 0, s * pt_per_split + pj)),
            ],
            out_specs=[
                pl.BlockSpec((1, C, 1), lambda n, s, pj: (n * nsplit + s, 0, 0)),
                pl.BlockSpec((1, C, 1), lambda n, s, pj: (n * nsplit + s, 0, 0)),
            ],
        ),
        compiler_params=pltpu.CompilerParams(
            dimension_semantics=("parallel", "parallel", "arbitrary"),
            vmem_limit_bytes=vmem_limit,
        ),
    )(logits_r, labels_r)

    counts = counts3[:, :, 0].reshape(N, nsplit, C).sum(axis=1)         # (N, C)
    cls_loss_sum = sums3[:, :, 0].reshape(N, nsplit, C).sum(axis=1)     # (N, C)

    # ---- get_freq_weights (tiny N x C, plain JAX glue) ----
    cls_sum = jnp.sum(counts, axis=0)                         # (C,)
    freq = counts / cls_sum[None, :]                          # (N, C)
    flat_sorted = jnp.sort(freq.reshape(-1))
    median = flat_sorted[(flat_sorted.shape[0] - 1) // 2]     # torch.median: lower median
    freq = jnp.where(freq == 0, median, freq)
    freq_w = median / freq                                    # (N, C)

    # result = mean over (N, C, H, W) of cls_loss * freq_w
    #   cls_loss[n,c,h,w] = CE(n,h,w) if labels==c else 0, so
    #   sum(result) == sum_{n,c} cls_loss_sum[n,c] * freq_w[n,c]
    return jnp.sum(cls_loss_sum * freq_w) / (N * C * H * W)


def _wce_loss_ref(logits, labels):
    """Pure-JAX reference mirroring the PyTorch code, for correctness check."""
    N, C, H, W = logits.shape
    logits = logits.astype(jnp.float32)
    labels = labels.astype(jnp.int32)
    lse = jax.nn.logsumexp(logits, axis=1)                         # (N, H, W)
    onehot = jax.nn.one_hot(labels, C, axis=1, dtype=jnp.float32)  # (N, C, H, W)
    picked = jnp.sum(onehot * logits, axis=1)                      # (N, H, W)
    loss = jnp.where(labels != IGNORE_LB, lse - picked, 0.0)       # (N, H, W)
    counts = jnp.sum(onehot, axis=(2, 3))                          # (N, C)
    freq = counts / jnp.sum(counts, axis=0, keepdims=True)
    srt = jnp.sort(freq.reshape(-1))
    median = srt[(srt.shape[0] - 1) // 2]
    freq = jnp.where(freq == 0, median, freq)
    freq_w = median / freq
    cls_loss = onehot * loss[:, None, :, :]
    result = cls_loss * freq_w[:, :, None, None]
    return jnp.mean(result)


if __name__ == "__main__":
    key = jax.random.PRNGKey(0)
    k1, k2, k3, k4 = jax.random.split(key, 4)

    # Test 1: batch=2, classes=4, 16x16 -> single pixel tile per batch element,
    # batch axis 'parallel'.
    N, C, H, W = 2, 4, 16, 16
    logits = jax.random.normal(k1, (N, C, H, W), dtype=jnp.float32)
    labels = jax.random.randint(k2, (N, H, W), 0, C, dtype=jnp.int32)
    labels = labels.at[:, 0, :3].set(IGNORE_LB)          # exercise ignore_index path

    out = jax.block_until_ready(wce_loss(logits, labels))
    ref = jax.block_until_ready(_wce_loss_ref(logits, labels))
    assert jnp.allclose(out, ref, rtol=1e-5, atol=1e-6), (out, ref)

    # Test 2: batch=1, 40x40 with a forced small tile -> exercises multi-tile
    # accumulation, ragged-tail padding (label=255), and the 2-way parallel pixel
    # split used to feed both v7x TensorCores when N == 1.
    N2, C2, H2, W2 = 1, 4, 40, 40
    logits2 = jax.random.normal(k3, (N2, C2, H2, W2), dtype=jnp.float32)
    labels2 = jax.random.randint(k4, (N2, H2, W2), 0, C2, dtype=jnp.int32)
    labels2 = labels2.at[:, 1, :5].set(IGNORE_LB)

    out2 = jax.block_until_ready(wce_loss(logits2, labels2, pixel_tile=256))
    ref2 = jax.block_until_ready(_wce_loss_ref(logits2, labels2))
    assert jnp.allclose(out2, ref2, rtol=1e-5, atol=1e-6), (out2, ref2)

    print("KERNEL_OK")
</pallas_src>

<mosaic_0001>
module attributes {stable_mosaic.version = 11 : i64} {
  func.func @_wce_stats_kernel(%arg0: i32, %arg1: i32, %arg2: i32, %arg3: memref<1x4x256xf32, #tpu.memory_space<vmem>>, %arg4: memref<1x1x256xi32, #tpu.memory_space<vmem>>, %arg5: memref<1x4x1xf32, #tpu.memory_space<vmem>>, %arg6: memref<1x4x1xf32, #tpu.memory_space<vmem>>) attributes {dimension_semantics = [#tpu.dimension_semantics<parallel>, #tpu.dimension_semantics<parallel>, #tpu.dimension_semantics<arbitrary>], iteration_bounds = array<i64: 2, 1, 1>, scalar_prefetch = 0 : i64, scratch_operands = 0 : i64, tpu.core_type = #tpu.core_type<tc>, window_params = [{transform_indices = @transform_0, window_bounds = array<i64: 1, 4, 256>}, {transform_indices = @transform_1, window_bounds = array<i64: 1, 1, 256>}, {transform_indices = @transform_2, window_bounds = array<i64: 1, 4, 1>}, {transform_indices = @transform_3, window_bounds = array<i64: 1, 4, 1>}]} {
    %c0_i32 = arith.constant 0 : i32
    %0 = arith.cmpi eq, %arg2, %c0_i32 : i32
    %1 = arith.extui %0 : i1 to i32
    %c0_i32_0 = arith.constant 0 : i32
    %2 = arith.cmpi ne, %1, %c0_i32_0 : i32
    scf.if %2 {
      %cst_23 = arith.constant 0.000000e+00 : f32
      %47 = vector.broadcast %cst_23 : f32 to vector<1x4x1xf32>
      %c0_24 = arith.constant 0 : index
      %c0_25 = arith.constant 0 : index
      %c0_26 = arith.constant 0 : index
      %48 = vector.load %arg5[%c0_24, %c0_25, %c0_26] : memref<1x4x1xf32, #tpu.memory_space<vmem>>, vector<1x4x1xf32>
      tpu.vector_store %arg5[%c0_24, %c0_25, %c0_26], %47 {strides = array<i32>} : memref<1x4x1xf32, #tpu.memory_space<vmem>>, vector<1x4x1xf32>,
      %cst_27 = arith.constant 0.000000e+00 : f32
      %49 = vector.broadcast %cst_27 : f32 to vector<1x4x1xf32>
      %c0_28 = arith.constant 0 : index
      %c0_29 = arith.constant 0 : index
      %c0_30 = arith.constant 0 : index
      %50 = vector.load %arg6[%c0_28, %c0_29, %c0_30] : memref<1x4x1xf32, #tpu.memory_space<vmem>>, vector<1x4x1xf32>
      tpu.vector_store %arg6[%c0_28, %c0_29, %c0_30], %49 {strides = array<i32>} : memref<1x4x1xf32, #tpu.memory_space<vmem>>, vector<1x4x1xf32>,
    } else {
    }
    %c0 = arith.constant 0 : index
    %c0_1 = arith.constant 0 : index
    %c0_2 = arith.constant 0 : index
    %3 = vector.load %arg3[%c0, %c0_1, %c0_2] : memref<1x4x256xf32, #tpu.memory_space<vmem>>, vector<1x4x256xf32>
    %4 = vector.shape_cast %3 : vector<1x4x256xf32> to vector<4x256xf32>
    %c0_3 = arith.constant 0 : index
    %c0_4 = arith.constant 0 : index
    %c0_5 = arith.constant 0 : index
    %5 = vector.load %arg4[%c0_3, %c0_4, %c0_5] : memref<1x1x256xi32, #tpu.memory_space<vmem>>, vector<1x1x256xi32>
    %6 = vector.shape_cast %5 : vector<1x1x256xi32> to vector<1x256xi32>
    %cst = arith.constant dense<0xFF800000> : vector<256xf32>
    %7 = vector.multi_reduction <maximumf>, %4, %cst [0] : vector<4x256xf32> to vector<256xf32>
    %8 = vector.shape_cast %7 : vector<256xf32> to vector<1x256xf32>
    %9 = vector.broadcast %8 : vector<1x256xf32> to vector<4x256xf32>
    %10 = arith.subf %4, %9 : vector<4x256xf32>
    %11 = math.exp %10 : vector<4x256xf32>
    %cst_6 = arith.constant dense<0.000000e+00> : vector<256xf32>
    %12 = vector.multi_reduction <add>, %11, %cst_6 [0] : vector<4x256xf32> to vector<256xf32>
    %13 = vector.shape_cast %12 : vector<256xf32> to vector<1x256xf32>
    %14 = math.log %13 : vector<1x256xf32>
    %15 = arith.addf %8, %14 : vector<1x256xf32>
    %16 = tpu.iota {dimensions = array<i32: 0>} : vector<4x256xi32>
    %17 = vector.broadcast %6 : vector<1x256xi32> to vector<4x256xi32>
    %18 = arith.cmpi eq, %16, %17 : vector<4x256xi32>
    %19 = arith.extui %18 : vector<4x256xi1> to vector<4x256xi32>
    %20 = arith.sitofp %19 : vector<4x256xi32> to vector<4x256xf32>
    %21 = arith.mulf %20, %4 : vector<4x256xf32>
    %cst_7 = arith.constant dense<0.000000e+00> : vector<256xf32>
    %22 = vector.multi_reduction <add>, %21, %cst_7 [0] : vector<4x256xf32> to vector<256xf32>
    %23 = vector.shape_cast %22 : vector<256xf32> to vector<1x256xf32>
    %c255_i32 = arith.constant 255 : i32
    %24 = vector.broadcast %c255_i32 : i32 to vector<1x256xi32>
    %25 = arith.cmpi ne, %6, %24 : vector<1x256xi32>
    %26 = arith.subf %15, %23 : vector<1x256xf32>
    %cst_8 = arith.constant 0.000000e+00 : f32
    %27 = vector.broadcast %cst_8 : f32 to vector<1x256xf32>
    %28 = arith.select %25, %26, %27 : vector<1x256xi1>, vector<1x256xf32>
    %c0_9 = arith.constant 0 : index
    %c0_10 = arith.constant 0 : index
    %c0_11 = arith.constant 0 : index
    %29 = vector.load %arg5[%c0_9, %c0_10, %c0_11] : memref<1x4x1xf32, #tpu.memory_space<vmem>>, vector<1x4x1xf32>
    %30 = vector.shape_cast %29 : vector<1x4x1xf32> to vector<4x1xf32>
    %cst_12 = arith.constant dense<0.000000e+00> : vector<4xf32>
    %31 = vector.multi_reduction <add>, %20, %cst_12 [1] : vector<4x256xf32> to vector<4xf32>
    %32 = vector.shape_cast %31 : vector<4xf32> to vector<4x1xf32>
    %33 = arith.addf %30, %32 : vector<4x1xf32>
    %c0_13 = arith.constant 0 : index
    %c0_14 = arith.constant 0 : index
    %c0_15 = arith.constant 0 : index
    %34 = vector.load %arg5[%c0_13, %c0_14, %c0_15] : memref<1x4x1xf32, #tpu.memory_space<vmem>>, vector<1x4x1xf32>
    %35 = vector.shape_cast %34 : vector<1x4x1xf32> to vector<4x1xf32>
    %36 = vector.shape_cast %33 : vector<4x1xf32> to vector<1x4x1xf32>
    tpu.vector_store %arg5[%c0_13, %c0_14, %c0_15], %36 {strides = array<i32>} : memref<1x4x1xf32, #tpu.memory_space<vmem>>, vector<1x4x1xf32>,
    %c0_16 = arith.constant 0 : index
    %c0_17 = arith.constant 0 : index
    %c0_18 = arith.constant 0 : index
    %37 = vector.load %arg6[%c0_16, %c0_17, %c0_18] : memref<1x4x1xf32, #tpu.memory_space<vmem>>, vector<1x4x1xf32>
    %38 = vector.shape_cast %37 : vector<1x4x1xf32> to vector<4x1xf32>
    %39 = vector.broadcast %28 : vector<1x256xf32> to vector<4x256xf32>
    %40 = arith.mulf %20, %39 : vector<4x256xf32>
    %cst_19 = arith.constant dense<0.000000e+00> : vector<4xf32>
    %41 = vector.multi_reduction <add>, %40, %cst_19 [1] : vector<4x256xf32> to vector<4xf32>
    %42 = vector.shape_cast %41 : vector<4xf32> to vector<4x1xf32>
    %43 = arith.addf %38, %42 : vector<4x1xf32>
    %c0_20 = arith.constant 0 : index
    %c0_21 = arith.constant 0 : index
    %c0_22 = arith.constant 0 : index
    %44 = vector.load %arg6[%c0_20, %c0_21, %c0_22] : memref<1x4x1xf32, #tpu.memory_space<vmem>>, vector<1x4x1xf32>
    %45 = vector.shape_cast %44 : vector<1x4x1xf32> to vector<4x1xf32>
    %46 = vector.shape_cast %43 : vector<4x1xf32> to vector<1x4x1xf32>
    tpu.vector_store %arg6[%c0_20, %c0_21, %c0_22], %46 {strides = array<i32>} : memref<1x4x1xf32, #tpu.memory_space<vmem>>, vector<1x4x1xf32>,
    return
  }
  func.func @transform_0(%arg0: i32, %arg1: i32, %arg2: i32) -> (i32, i32, i32) {
    %c1_i32 = arith.constant 1 : i32
    %0 = arith.muli %arg1, %c1_i32 : i32
    %1 = arith.addi %0, %arg2 : i32
    %c0_i32 = arith.constant 0 : i32
    %c0_i32_0 = arith.constant 0 : i32
    return %arg0, %c0_i32, %1 : i32, i32, i32
  }
  func.func @transform_1(%arg0: i32, %arg1: i32, %arg2: i32) -> (i32, i32, i32) {
    %c1_i32 = arith.constant 1 : i32
    %0 = arith.muli %arg1, %c1_i32 : i32
    %1 = arith.addi %0, %arg2 : i32
    %c0_i32 = arith.constant 0 : i32
    %c0_i32_0 = arith.constant 0 : i32
    return %arg0, %c0_i32, %1 : i32, i32, i32
  }
  func.func @transform_2(%arg0: i32, %arg1: i32, %arg2: i32) -> (i32, i32, i32) {
    %c1_i32 = arith.constant 1 : i32
    %0 = arith.muli %arg0, %c1_i32 : i32
    %1 = arith.addi %0, %arg1 : i32
    %c0_i32 = arith.constant 0 : i32
    %c0_i32_0 = arith.constant 0 : i32
    %c0_i32_1 = arith.constant 0 : i32
    return %1, %c0_i32, %c0_i32_0 : i32, i32, i32
  }
  func.func @transform_3(%arg0: i32, %arg1: i32, %arg2: i32) -> (i32, i32, i32) {
    %c1_i32 = arith.constant 1 : i32
    %0 = arith.muli %arg0, %c1_i32 : i32
    %1 = arith.addi %0, %arg1 : i32
    %c0_i32 = arith.constant 0 : i32
    %c0_i32_0 = arith.constant 0 : i32
    %c0_i32_1 = arith.constant 0 : i32
    return %1, %c0_i32, %c0_i32_0 : i32, i32, i32
  }
}

</mosaic_0001>

<llo_original>
// kernel: tpu_custom_call.1
$region0: #{tpu_custom_call.1}
  #allocation0 [shape = 'u32[]', space=smem, size = 0x4, offset = 0x4, fixed_abs, tag = 'smem constant byte address 0x4 - core index']
  #allocation1 [shape = 'u32[72,128]{1,0:T(1,128)}', space=vmem, size = 0x9000, scoped, tag = 'internal scratch']
  %s0 = inlined_call_operand.hbm [shape: f32[2,4,256], index: 0, kind: input, shape index: {}]
  %s1 = inlined_call_operand.hbm [shape: s32[2,1,256], index: 1, kind: input, shape index: {}]
  %s2 = inlined_call_operand.vmem [shape: f32[2,4,1], index: 2, kind: output, shape index: {0}]
  %s3 = inlined_call_operand.vmem [shape: f32[2,4,1], index: 3, kind: output, shape index: {1}]
  %4 = xla_tuple %s2, %s3
  %s5 = sld [smem:[#allocation0]]
  $region61: #{tpu_custom_call.1} parent=0
    _
  %s7 = ssub.s32 1, %s5
  %s8 = scalar_select 0, %s7, %s5
  $region1: #{tpu_custom_call.1} parent=0
    #allocation2 [shape = 'u8[8192]{0}', space=vmem, size = 0x2000, scoped, tag = 'input window, operand 0']
    #allocation3 [shape = 's32[2]{0}', space=sflag, size = 0x8, scoped, tag = 'scoped memory for tpu_custom_call.1']
    #allocation4 [shape = 'u8[2048]{0}', space=vmem, size = 0x800, scoped, tag = 'input window, operand 1']
    #allocation5 [shape = 's32[2]{0}', space=sflag, size = 0x8, scoped, tag = 'scoped memory for tpu_custom_call.1']
    %9 = vsyncpa [#allocation3], 0
    %s10 = scalar_lea.sflag [#allocation3], 1
    %11 = vsyncpa %s10, 0
    %12 = vsyncpa [#allocation5], 0
    %s13 = scalar_lea.sflag [#allocation5], 1
    %14 = vsyncpa %s13, 0
    loop: start=0, step=1, limit=4
    $region2: #{tpu_custom_call.1} parent=1 // loop_pre_header
      _
    $region3: #{tpu_custom_call.1} parent=1 // loop_header
      %s16 = sphi 0, %s20
      %p17 = scmp.ge.s32.totalorder %s16, 4
      %s23 = sphi 0, %s42
      %s24 = sphi 0, %s38
      %s25 = sphi 0, %s34
      %s26 = sphi 0, %s23
      %s27 = sphi 0, %s24
      %s28 = sphi 0, %s25
      %s29 = sphi 0, %s26
      %s30 = sphi 0, %s27
      %s31 = sphi 0, %s28
      %s49 = sphi 0, %s51
      %s52 = sphi 0, %s49
      %s53 = sphi 0, %s52
      %s69 = sphi 0, %s53
      %s79 = sphi 0, %s81
      %s82 = sphi 0, %s79
      %s83 = sphi 0, %s82
      %s99 = sphi 0, %s83
      %s107 = sphi 0, %s109
      %s110 = sphi 0, %s107
      %s111 = sphi 0, %s110
      %s127 = sphi 0, %s111
      %s135 = sphi 0, %s137
      %s138 = sphi 0, %s135
      %s139 = sphi 0, %s138
      %s155 = sphi 0, %s139
    $region4: #{tpu_custom_call.1} parent=1 // loop_header_branch
      %19 = sbr.rel (%p17) target = $region8
    $region5: #{tpu_custom_call.1} parent=1 // loop_body
      %s21 = ssub.s32 %s16, 1
      %s22 = ssub.s32 %s16, 2
      %s32 = sadd.s32 1, %s25
      %p33 = scmp.ge.s32.totalorder %s32, 1
      %s34 = scalar_select %p33, 0, %s32
      %s35 = sadd.s32 1, %s24
      %s36 = scalar_select %p33, %s35, %s24
      %p37 = scmp.ge.s32.totalorder %s36, 1
      %s38 = scalar_select %p37, 0, %s36
      %s39 = sadd.s32 1, %s23
      %s40 = scalar_select %p37, %s39, %s23
      %p41 = scmp.ge.s32.totalorder %s40, 2
      %s42 = scalar_select %p41, 0, %s40
      %s43 = sadd.s32 %s24, %s25
      %s44 = sadd.s32 %s38, %s34
      %s45 = ssub.s32 %s23, %s42
      %s46 = ssub.s32 %s43, %s44
      %s47 = sor.u32 %s45, %s46
      %p48 = scmp.eq.s32.totalorder %s47, 0
      %s50 = sadd.s32 %s49, 1
      %s51 = scalar_select %p48, %s49, %s50
      %p54 = pneg %p48
      %p55 = scmp.eq.s32.totalorder %s16, 1
      %p56 = por %p54, %p55
      %p57 = scmp.ne.s32.totalorder %s49, %s52
      %p58 = scmp.eq.s32.totalorder %s16, 0
      %p59 = por %p57, %p58
      %p60 = scmp.ne.s32.totalorder %s49, %s52
      %p61 = scmp.eq.s32.totalorder %s21, 1
      %p62 = por %p60, %p61
      %p63 = scmp.ne.s32.totalorder %s52, %s53
      %p64 = scmp.eq.s32.totalorder %s21, 0
      %p65 = por %p63, %p64
      %p66 = scmp.ne.s32.totalorder %s52, %s53
      %p67 = scmp.eq.s32.totalorder %s22, 1
      %p68 = por %p66, %p67
      %p70 = scmp.ne.s32.totalorder %s53, %s69
      %p71 = scmp.eq.s32.totalorder %s22, 0
      %p72 = por %p70, %p71
      %s73 = sadd.s32 %s24, %s25
      %s74 = sadd.s32 %s38, %s34
      %s75 = ssub.s32 %s23, %s42
      %s76 = ssub.s32 %s73, %s74
      %s77 = sor.u32 %s75, %s76
      %p78 = scmp.eq.s32.totalorder %s77, 0
      %s80 = sadd.s32 %s79, 1
      %s81 = scalar_select %p78, %s79, %s80
      %p84 = pneg %p78
      %p85 = scmp.eq.s32.totalorder %s16, 1
      %p86 = por %p84, %p85
      %p87 = scmp.ne.s32.totalorder %s79, %s82
      %p88 = scmp.eq.s32.totalorder %s16, 0
      %p89 = por %p87, %p88
      %p90 = scmp.ne.s32.totalorder %s79, %s82
      %p91 = scmp.eq.s32.totalorder %s21, 1
      %p92 = por %p90, %p91
      %p93 = scmp.ne.s32.totalorder %s82, %s83
      %p94 = scmp.eq.s32.totalorder %s21, 0
      %p95 = por %p93, %p94
      %p96 = scmp.ne.s32.totalorder %s82, %s83
      %p97 = scmp.eq.s32.totalorder %s22, 1
      %p98 = por %p96, %p97
      %p100 = scmp.ne.s32.totalorder %s83, %s99
      %p101 = scmp.eq.s32.totalorder %s22, 0
      %p102 = por %p100, %p101
      %s103 = sadd.s32 %s23, %s24
      %s104 = sadd.s32 %s42, %s38
      %s105 = ssub.s32 %s103, %s104
      %p106 = scmp.eq.s32.totalorder %s105, 0
      %s108 = sadd.s32 %s107, 1
      %s109 = scalar_select %p106, %s107, %s108
      %p112 = pneg %p106
      %p113 = scmp.eq.s32.totalorder %s16, 1
      %p114 = por %p112, %p113
      %p115 = scmp.ne.s32.totalorder %s107, %s110
      %p116 = scmp.eq.s32.totalorder %s16, 0
      %p117 = por %p115, %p116
      %p118 = scmp.ne.s32.totalorder %s107, %s110
      %p119 = scmp.eq.s32.totalorder %s21, 1
      %p120 = por %p118, %p119
      %p121 = scmp.ne.s32.totalorder %s110, %s111
      %p122 = scmp.eq.s32.totalorder %s21, 0
      %p123 = por %p121, %p122
      %p124 = scmp.ne.s32.totalorder %s110, %s111
      %p125 = scmp.eq.s32.totalorder %s22, 1
      %p126 = por %p124, %p125
      %p128 = scmp.ne.s32.totalorder %s111, %s127
      %p129 = scmp.eq.s32.totalorder %s22, 0
      %p130 = por %p128, %p129
      %s131 = sadd.s32 %s23, %s24
      %s132 = sadd.s32 %s42, %s38
      %s133 = ssub.s32 %s131, %s132
      %p134 = scmp.eq.s32.totalorder %s133, 0
      %s136 = sadd.s32 %s135, 1
      %s137 = scalar_select %p134, %s135, %s136
      %p140 = pneg %p134
      %p141 = scmp.eq.s32.totalorder %s16, 1
      %p142 = por %p140, %p141
      %p143 = scmp.ne.s32.totalorder %s135, %s138
      %p144 = scmp.eq.s32.totalorder %s16, 0
      %p145 = por %p143, %p144
      %p146 = scmp.ne.s32.totalorder %s135, %s138
      %p147 = scmp.eq.s32.totalorder %s21, 1
      %p148 = por %p146, %p147
      %p149 = scmp.ne.s32.totalorder %s138, %s139
      %p150 = scmp.eq.s32.totalorder %s21, 0
      %p151 = por %p149, %p150
      %p152 = scmp.ne.s32.totalorder %s138, %s139
      %p153 = scmp.eq.s32.totalorder %s22, 1
      %p154 = por %p152, %p153
      %p156 = scmp.ne.s32.totalorder %s139, %s155
      %p157 = scmp.eq.s32.totalorder %s22, 0
      %p158 = por %p156, %p157
      %p159 = scmp.le.s32.totalorder 1, %s16
      %p160 = scmp.lt.s32.totalorder %s16, 3
      %p161 = pnand %p159, %p160
      %p162 = pneg %p161
      // Predicated region
      $region9: #{tpu_custom_call.1} parent=5 // pred_check
        _
      $region10: #{tpu_custom_call.1} parent=5 // pred_check_branch
        %164 = sbr.rel (%p161) target = $region12
      $region11: #{tpu_custom_call.1} parent=5 // pred_region
        %s165 = ssub.s32 %s16, 1
      $region12: #{tpu_custom_call.1} parent=5 // pred_fallthru
        _
      %p166 = scmp.lt.s32.totalorder %s16, 2
      // Predicated region
      $region13: #{tpu_custom_call.1} parent=5 // pred_check
        %p167 = pneg %p166
      $region14: #{tpu_custom_call.1} parent=5 // pred_check_branch
        %169 = sbr.rel (%p167) target = $region16
      $region15: #{tpu_custom_call.1} parent=5 // pred_region
        // Predicated region
        $region17: #{tpu_custom_call.1} parent=15 // pred_check
          %p170 = pneg %p59
        $region18: #{tpu_custom_call.1} parent=15 // pred_check_branch
          %172 = sbr.rel (%p170) target = $region20
        $region19: #{tpu_custom_call.1} parent=15 // pred_region
          %s173 = sand.u32 %s49, 1
          %s174 = scalar_lea.sflag [#allocation3], %s173
          %s175 = sand.u32 %s49, 1
          %s176 = smul.addr %s175, 8
          %s177 = scalar_lea.vmem [#allocation2], %s176
          %s178 = sadd.s32 %s24, %s25
          %s179 = smul.u32 2, %s178
          %181 = vsyncadd %s174, 0
          %s182 = smul.addr %s23, 2
          %s183 = sadd.s32 %s179, %s182
          %s184 = smul.addr %s183, 4
          %s185 = scalar_lea.hbm %s0, %s184
          %s187 = sshll.u32 %s185, 4
          %s188 = int_to_ptr.hbm [resolvable:$true] %s187
          %s189 = sshll.u32 %s177, 4
          %s190 = int_to_ptr.vmem [resolvable:$true] %s189
          %192 = dma.hbm_to_vmem [thread:$0]  %s188, 128, %s190, %s174
        $region20: #{tpu_custom_call.1} parent=15 // pred_fallthru
          _
        // Predicated region
        $region21: #{tpu_custom_call.1} parent=15 // pred_check
          %p193 = pneg %p89
        $region22: #{tpu_custom_call.1} parent=15 // pred_check_branch
          %195 = sbr.rel (%p193) target = $region24
        $region23: #{tpu_custom_call.1} parent=15 // pred_region
          %s196 = sand.u32 %s79, 1
          %s197 = scalar_lea.sflag [#allocation5], %s196
          %s198 = sand.u32 %s79, 1
          %s199 = smul.addr %s198, 2
          %s200 = scalar_lea.vmem [#allocation4], %s199
          %s201 = sadd.s32 %s24, %s25
          %s202 = smul.u32 2, %s201
          %204 = vsyncadd %s197, 0
          %s205 = smul.addr %s23, 2
          %s206 = sadd.s32 %s202, %s205
          %s207 = scalar_lea.hbm %s1, %s206
          %s209 = sshll.u32 %s207, 4
          %s210 = int_to_ptr.hbm [resolvable:$true] %s209
          %s211 = sshll.u32 %s200, 4
          %s212 = int_to_ptr.vmem [resolvable:$true] %s211
          %214 = dma.hbm_to_vmem [thread:$0]  %s210, 32, %s212, %s197
        $region24: #{tpu_custom_call.1} parent=15 // pred_fallthru
          _
      $region16: #{tpu_custom_call.1} parent=5 // pred_fallthru
        _
      %p215 = scmp.le.s32.totalorder 1, %s16
      %p216 = scmp.lt.s32.totalorder %s16, 3
      %p217 = pnand %p215, %p216
      %p218 = pneg %p217
      // Predicated region
      $region25: #{tpu_custom_call.1} parent=5 // pred_check
        _
      $region26: #{tpu_custom_call.1} parent=5 // pred_check_branch
        %220 = sbr.rel (%p217) target = $region28
      $region27: #{tpu_custom_call.1} parent=5 // pred_region
        %s221 = ssub.s32 %s16, 1
        %s222 = sand.u32 %s52, 1
        %s223 = scalar_lea.sflag [#allocation3], %s222
        %s224 = sand.u32 %s52, 1
        %s225 = smul.addr %s224, 8
        %s226 = scalar_lea.vmem [#allocation2], %s225
        // Predicated region
        $region29: #{tpu_custom_call.1} parent=27 // pred_check
          %p227 = pneg %p65
        $region30: #{tpu_custom_call.1} parent=27 // pred_check_branch
          %229 = sbr.rel (%p227) target = $region32
        $region31: #{tpu_custom_call.1} parent=27 // pred_region
          %231 = dma.done %s223, 128
        $region32: #{tpu_custom_call.1} parent=27 // pred_fallthru
          _
        %s232 = sand.u32 %s82, 1
        %s233 = scalar_lea.sflag [#allocation5], %s232
        %s234 = sand.u32 %s82, 1
        %s235 = smul.addr %s234, 2
        %s236 = scalar_lea.vmem [#allocation4], %s235
        // Predicated region
        $region33: #{tpu_custom_call.1} parent=27 // pred_check
          %p237 = pneg %p95
        $region34: #{tpu_custom_call.1} parent=27 // pred_check_branch
          %239 = sbr.rel (%p237) target = $region36
        $region35: #{tpu_custom_call.1} parent=27 // pred_region
          %241 = dma.done %s233, 32
        $region36: #{tpu_custom_call.1} parent=27 // pred_fallthru
          _
        %s242 = sand.u32 %s52, 1
        %s243 = scalar_lea.sflag [#allocation3], %s242
        %s244 = sand.u32 %s52, 1
        %s245 = smul.addr %s244, 8
        %s246 = scalar_lea.vmem [#allocation2], %s245
        %p247 = pneg %p65
        %p248 = pneg %p62
        %s249 = sand.u32 %s82, 1
        %s250 = scalar_lea.sflag [#allocation5], %s249
        %s251 = sand.u32 %s82, 1
        %s252 = smul.addr %s251, 2
        %s253 = scalar_lea.vmem [#allocation4], %s252
        %p254 = pneg %p95
        %p255 = pneg %p92
        %p256 = pneg %p123
        %p257 = pneg %p120
        %s258 = sadd.s32 %s26, %s27
        %p259 = scmp.lt.s32.totalorder %s258, 1
        %s260 = scalar_select %p259, %s258, 1
        %s261 = smul.addr %s260, 4
        %s262 = scalar_lea.vmem %s2, %s261
        %p263 = pneg %p151
        %p264 = pneg %p148
        %s265 = sadd.s32 %s26, %s27
        %p266 = scmp.lt.s32.totalorder %s265, 1
        %s267 = scalar_select %p266, %s265, 1
        %s268 = smul.addr %s267, 4
        %s269 = scalar_lea.vmem %s3, %s268
        %s270 = sadd.s32 %s27, %s28
        %s271 = smul.u32 2, %s270
        %s272 = sadd.s32 %s27, %s28
        %s273 = smul.u32 2, %s272
        %s274 = sadd.s32 %s26, %s27
        %p275 = scmp.lt.s32.totalorder %s274, 1
        %s276 = scalar_select %p275, %s274, 1
        %s277 = smul.addr %s276, 4
        %s278 = scalar_lea.vmem %s2, %s277
        %s279 = sadd.s32 %s26, %s27
        %s280 = sadd.s32 %s26, %s27
        %p281 = scmp.lt.s32.totalorder %s280, 1
        %s282 = scalar_select %p281, %s280, 1
        %s283 = smul.addr %s282, 4
        %s284 = scalar_lea.vmem %s3, %s283
        %s285 = sadd.s32 %s26, %s27
        %p286 = scmp.eq.s32.totalorder %s28, 0
        // Predicated region
        $region37: #{tpu_custom_call.1} parent=27 // pred_check
          %p287 = pneg %p286
        $region38: #{tpu_custom_call.1} parent=27 // pred_check_branch
          %289 = sbr.rel (%p287) target = $region40
        $region39: #{tpu_custom_call.1} parent=27 // pred_region
          %vm290 = vcmask 3072
          %291 = vst.msk [vmem:[%s278] sm:$0xf] %vm290, 0.0
          %292 = vst.msk [vmem:[%s284] sm:$0xf] %vm290, 0.0
        $region40: #{tpu_custom_call.1} parent=27 // pred_fallthru
          _
        %v293 = vld [vmem:[%s226] sm:$0xff]
        %v294 = vld [vmem:[%s236] sm:$0x3]
        %296 = vst [vmem:[#allocation1] ss:$2 sm:$0xff] %v293
        %v297 = vld.sshfl [vmem:[#allocation1] sm:$0xff pattern:$0x75316420]
        %v298 = vld.sshfl [vmem:[#allocation1 + $0x8] sm:$0xff pattern:$0x75316420]
        %vm301 = vcmask 1043456
        %v302 = vsel %vm301, %v297, -inf
        %v303 = vrot.slane %v302, 4
        %v304 = vmax.f32 %v302, %v303
        %v305 = vrot.slane %v304, 2
        %v306 = vmax.f32 %v304, %v305
        %v307 = vrot.slane %v306, 1
        %v308 = vmax.f32 %v306, %v307
        %v309 = vsel %vm301, %v298, -inf
        %v310 = vrot.slane %v309, 4
        %v311 = vmax.f32 %v309, %v310
        %v312 = vrot.slane %v311, 2
        %v313 = vmax.f32 %v311, %v312
        %v314 = vrot.slane %v313, 1
        %v315 = vmax.f32 %v313, %v314
        %v318 = vrot.slane %v315, 4
        %v319 = vsel %vm301, %v308, %v318
        %v321 = vsub.f32 %v293, %v319
        %v322 = vmul.f32 %v321, 1.442695
        %v323 = vpow.pop %v322
        %325 = vst [vmem:[#allocation1] ss:$2 sm:$0xff] %v323
        %v326 = vld.sshfl [vmem:[#allocation1] sm:$0xff pattern:$0x75316420]
        %v327 = vld.sshfl [vmem:[#allocation1 + $0x8] sm:$0xff pattern:$0x75316420]
        %v330 = vsel %vm301, %v326, 0.0
        %v331 = vrot.slane %v330, 4
        %v332 = vadd.f32 %v330, %v331
        %v333 = vrot.slane %v332, 2
        %v334 = vadd.f32 %v332, %v333
        %v335 = vrot.slane %v334, 1
        %v336 = vadd.f32 %v334, %v335
        %v337 = vsel %vm301, %v327, 0.0
        %v338 = vrot.slane %v337, 4
        %v339 = vadd.f32 %v337, %v338
        %v340 = vrot.slane %v339, 2
        %v341 = vadd.f32 %v339, %v340
        %v342 = vrot.slane %v341, 1
        %v343 = vadd.f32 %v341, %v342
        %v344 = vlog2.pop %v336
        %v345 = vmul.f32 %v344, 0.6931472
        %v346 = vlog2.pop %v343
        %v347 = vmul.f32 %v346, 0.6931472
        %v348 = vadd.f32 %v308, %v345
        %v349 = vadd.f32 %v315, %v347
        %v350 = vlaneseq
        %v351 = vshrl.u32 %v350, 7
        %v352 = vperm.slane %v294, 0
        %v353 = vperm.slane %v294, 1
        %vm354 = vcmp.eq.s32.totalorder %v351, %v352
        %vm355 = vcmp.eq.s32.totalorder %v351, %v353
        %v356 = vsel %vm354, 1, 0
        %v357 = vsel %vm355, 1, 0
        %v358 = vcvt.s32.f32 %v356
        %v359 = vcvt.s32.f32 %v357
        %360 = vst [vmem:[#allocation1] ss:$2 sm:$0xff] %v293
        %v361 = vld.sshfl [vmem:[#allocation1] sm:$0xff pattern:$0x75316420]
        %v362 = vld.sshfl [vmem:[#allocation1 + $0x8] sm:$0xff pattern:$0x75316420]
        %v365 = vmul.f32 %v358, %v361
        %v366 = vmul.f32 %v359, %v362
        %v367 = vsel %vm301, %v365, 0.0
        %v368 = vrot.slane %v367, 4
        %v369 = vadd.f32 %v367, %v368
        %v370 = vrot.slane %v369, 2
        %v371 = vadd.f32 %v369, %v370
        %v372 = vrot.slane %v371, 1
        %v373 = vadd.f32 %v371, %v372
        %v374 = vsel %vm301, %v366, 0.0
        %v375 = vrot.slane %v374, 4
        %v376 = vadd.f32 %v374, %v375
        %v377 = vrot.slane %v376, 2
        %v378 = vadd.f32 %v376, %v377
        %v379 = vrot.slane %v378, 1
        %v380 = vadd.f32 %v378, %v379
        %vm381 = vcmp.ne.s32.totalorder %v294, 255
        %v382 = vsub.f32 %v348, %v373
        %v383 = vsub.f32 %v349, %v380
        %v386 = vrot.slane %v383, 7
        %vm387 = vcmask 1040384
        %v388 = vsel %vm387, %v382, %v386
        %v390 = vsel %vm381, %v388, 0.0
        %v391 = vld [vmem:[%s278] sm:$0xf]
        %v392 = vsel %vm301, %v358, 0.0
        %v393 = vsel %vm301, %v359, 0.0
        %v394 = vadd.f32 %v392, %v393
        %395 = vadd.xlane.f32.xlu0 %v394
        %v396 = vpop.xlane.xlu0 %395
        %v397 = vadd.f32 %v391, %v396
        %vm398 = vcmask 3072
        %399 = vst.msk [vmem:[%s278] sm:$0xf] %vm398, %v397
        %v400 = vld [vmem:[%s284] sm:$0xf]
        %v402 = vperm.slane %v390, 0
        %v403 = vperm.slane %v390, 1
        %v406 = vmul.f32 %v358, %v402
        %v407 = vmul.f32 %v359, %v403
        %v408 = vsel %vm301, %v406, 0.0
        %v409 = vsel %vm301, %v407, 0.0
        %v410 = vadd.f32 %v408, %v409
        %411 = vadd.xlane.f32.xlu0 %v410
        %v412 = vpop.xlane.xlu0 %411
        %v413 = vadd.f32 %v400, %v412
        %414 = vst.msk [vmem:[%s284] sm:$0xf] %vm398, %v413
        %s415 = sadd.s32 %s26, %s27
        %p416 = scmp.lt.s32.totalorder %s415, 1
        %s417 = scalar_select %p416, %s415, 1
        %s418 = smul.addr %s417, 4
        %s419 = scalar_lea.vmem %s2, %s418
        %s420 = sadd.s32 %s26, %s27
        %p421 = scmp.lt.s32.totalorder %s420, 1
        %s422 = scalar_select %p421, %s420, 1
        %s423 = smul.addr %s422, 4
        %s424 = scalar_lea.vmem %s3, %s423
        // Predicated region
        $region41: #{tpu_custom_call.1} parent=27 // pred_check
          %p425 = pneg %p120
        $region42: #{tpu_custom_call.1} parent=27 // pred_check_branch
          %427 = sbr.rel (%p425) target = $region44
        $region43: #{tpu_custom_call.1} parent=27 // pred_region
          %s428 = sadd.s32 %s26, %s27
        $region44: #{tpu_custom_call.1} parent=27 // pred_fallthru
          _
        // Predicated region
        $region45: #{tpu_custom_call.1} parent=27 // pred_check
          %p429 = pneg %p148
        $region46: #{tpu_custom_call.1} parent=27 // pred_check_branch
          %431 = sbr.rel (%p429) target = $region48
        $region47: #{tpu_custom_call.1} parent=27 // pred_region
          %s432 = sadd.s32 %s26, %s27
        $region48: #{tpu_custom_call.1} parent=27 // pred_fallthru
          _
      $region28: #{tpu_custom_call.1} parent=5 // pred_fallthru
        _
      %p433 = scmp.le.s32.totalorder 2, %s16
      // Predicated region
      $region49: #{tpu_custom_call.1} parent=5 // pred_check
        %p434 = pneg %p433
      $region50: #{tpu_custom_call.1} parent=5 // pred_check_branch
        %436 = sbr.rel (%p434) target = $region52
      $region51: #{tpu_custom_call.1} parent=5 // pred_region
        %s437 = ssub.s32 %s16, 2
        // Predicated region
        $region53: #{tpu_custom_call.1} parent=51 // pred_check
          %p438 = pneg %p126
        $region54: #{tpu_custom_call.1} parent=51 // pred_check_branch
          %440 = sbr.rel (%p438) target = $region56
        $region55: #{tpu_custom_call.1} parent=51 // pred_region
          %s441 = sadd.s32 %s29, %s30
          %p442 = scmp.lt.s32.totalorder %s441, 1
          %s443 = scalar_select %p442, %s441, 1
          %s444 = smul.addr %s443, 4
          %s445 = scalar_lea.vmem %s2, %s444
        $region56: #{tpu_custom_call.1} parent=51 // pred_fallthru
          _
        // Predicated region
        $region57: #{tpu_custom_call.1} parent=51 // pred_check
          %p446 = pneg %p154
        $region58: #{tpu_custom_call.1} parent=51 // pred_check_branch
          %448 = sbr.rel (%p446) target = $region60
        $region59: #{tpu_custom_call.1} parent=51 // pred_region
          %s449 = sadd.s32 %s29, %s30
          %p450 = scmp.lt.s32.totalorder %s449, 1
          %s451 = scalar_select %p450, %s449, 1
          %s452 = smul.addr %s451, 4
          %s453 = scalar_lea.vmem %s3, %s452
        $region60: #{tpu_custom_call.1} parent=51 // pred_fallthru
          _
      $region52: #{tpu_custom_call.1} parent=5 // pred_fallthru
        _
    $region6: #{tpu_custom_call.1} parent=1 // loop_footer
      %s20 = sadd.s32 1, %s16
    $region7: #{tpu_custom_call.1} parent=1 // loop_footer_branch
      %15 = sbr.rel target = $region3
    $region8: #{tpu_custom_call.1} parent=1 // loop_exit
      _
    %454 = vsyncpa [#allocation3], 1
    %s455 = scalar_lea.sflag [#allocation3], 1
    %456 = vsyncpa %s455, 1
    %457 = vsyncpa [#allocation5], 1
    %s458 = scalar_lea.sflag [#allocation5], 1
    %459 = vsyncpa %s458, 1

</llo_original>
